<compile_context>
chip_gen: v6e
topology: v6e:2x2x1
jax: 0.10.0
libtpu: 0.0.40
codegen_flags: <defaults>
</compile_context>

<pallas_src>
import jax
import jax.numpy as jnp
from jax.experimental import pallas as pl
from jax.experimental.pallas import tpu as pltpu


# Below this many output bytes (or when L_out < 128 lanes), a plain XLA slice
# copy is strictly cheaper than launching the kernel.
_SMALL_BYTES = 128 * 1024


def _chomp_copy_kernel(x_ref, o_ref):
    # Pure tile copy. Input and output blocks have identical shapes; Pallas
    # clips the partial last row/column blocks, so the chomped tail never
    # reaches the output.
    o_ref[...] = x_ref[...]


def _round_up(x: int, m: int) -> int:
    return ((x + m - 1) // m) * m


def chomp1d(x: jax.Array, chomp_size: int) -> jax.Array:
    """Pallas equivalent of Chomp1d(chomp_size)(x) for x of shape (N, C, L)."""
    N, C, L = x.shape

    # Degenerate / tiny cases: mirror PyTorch slicing with plain XLA.
    if chomp_size == 0:
        return x
    if not (0 < chomp_size < L):
        return x[:, :, :-chomp_size]

    L_out = L - chomp_size
    R = N * C
    itemsize = jnp.dtype(x.dtype).itemsize

    # Small-shape / narrow-lane bailout: kernel launch + per-step overhead
    # would dominate, and L_out < 128 forces masked stores everywhere.
    if L_out < 128 or R * L_out * itemsize < _SMALL_BYTES:
        return x[:, :, :L_out]

    x2 = x.reshape(R, L)

    # Dtype-native sublane alignment: 8 rows (f32), 16 (bf16/f16), 32 (int8/fp8).
    sub_align = {1: 32, 2: 16, 4: 8}.get(itemsize, 8)

    # Lane tile: multiple of 128, 512-1024 wide is the measured HBM-roofline
    # knee; cdiv grid handles the partial last column block.
    lane_cap = 1024
    tile_l = min(_round_up(L_out, 128), lane_cap)

    # Row tile: sized so the double-buffered (in + out) footprint stays under
    # a conservative 12 MiB budget (fits every generation's scoped default).
    vmem_budget = 12 * 1024 * 1024
    bytes_per_row = 4 * tile_l * itemsize  # 2 buffers x (in block + out block)
    rows_by_budget = max(sub_align, vmem_budget // bytes_per_row)

    if R <= sub_align:
        tile_r = R  # full-dim block is always legal
    else:
        tile_r = max(sub_align, (rows_by_budget // sub_align) * sub_align)
        tile_r = min(tile_r, _round_up(R, sub_align))
        # v7x megacore: make sure the grid has >= 2 blocks so both TCs get work.
        if pl.cdiv(R, tile_r) * pl.cdiv(L_out, tile_l) < 2:
            half = _round_up(pl.cdiv(R, 2), sub_align)
            if half < R:
                tile_r = half

    grid = (pl.cdiv(R, tile_r), pl.cdiv(L_out, tile_l))

    out2 = pl.pallas_call(
        _chomp_copy_kernel,
        out_shape=jax.ShapeDtypeStruct((R, L_out), x.dtype),
        grid_spec=pltpu.PrefetchScalarGridSpec(
            num_scalar_prefetch=0,
            grid=grid,
            in_specs=[
                pl.BlockSpec((tile_r, tile_l), lambda r, l: (r, l)),
            ],
            out_specs=pl.BlockSpec((tile_r, tile_l), lambda r, l: (r, l)),
        ),
        compiler_params=pltpu.CompilerParams(
            dimension_semantics=("parallel", "parallel"),
        ),
    )(x2)

    return out2.reshape(N, C, L_out)


if __name__ == "__main__":
    key = jax.random.PRNGKey(0)

    # Case 1: small TCN-like shape (bailout path -> plain XLA slice).
    N, C, L, chomp = 2, 4, 16, 3
    x = jax.random.normal(key, (N, C, L), dtype=jnp.float32)
    out = jax.block_until_ready(chomp1d(x, chomp))
    ref = x[:, :, :-chomp]
    assert out.shape == (N, C, L - chomp), out.shape
    assert out.dtype == x.dtype
    assert jnp.array_equal(out, ref), "chomp mismatch (bailout path)"

    # Case 2: Pallas kernel path, 128-aligned L_out (lane-dense everywhere).
    k2 = jax.random.PRNGKey(0)
    N2, C2, L2, chomp2 = 4, 8, 2051, 3  # R=32, L_out=2048
    x2 = jax.random.normal(k2, (N2, C2, L2), dtype=jnp.float32)
    out2 = jax.block_until_ready(chomp1d(x2, chomp2))
    ref2 = x2[:, :, :-chomp2]
    assert out2.shape == (N2, C2, L2 - chomp2), out2.shape
    assert jnp.array_equal(out2, ref2), "chomp mismatch (aligned kernel path)"

    # Case 3: Pallas kernel path, unaligned L_out (partial last column block).
    N3, C3, L3, chomp3 = 2, 16, 2050, 5  # R=32, L_out=2045
    x3 = jax.random.normal(jax.random.PRNGKey(0), (N3, C3, L3), dtype=jnp.float32)
    out3 = jax.block_until_ready(chomp1d(x3, chomp3))
    ref3 = x3[:, :, :-chomp3]
    assert out3.shape == (N3, C3, L3 - chomp3), out3.shape
    assert jnp.array_equal(out3, ref3), "chomp mismatch (unaligned kernel path)"

    # Case 4: bf16, unaligned L_out (dtype-native 16-row sublane alignment).
    N4, C4, L4, chomp4 = 2, 16, 3000, 7  # R=32, L_out=2993
    x4 = jax.random.normal(jax.random.PRNGKey(0), (N4, C4, L4),
                           dtype=jnp.bfloat16)
    out4 = jax.block_until_ready(chomp1d(x4, chomp4))
    ref4 = x4[:, :, :-chomp4]
    assert out4.shape == (N4, C4, L4 - chomp4), out4.shape
    assert out4.dtype == jnp.bfloat16
    assert jnp.array_equal(out4, ref4), "chomp mismatch (bf16 kernel path)"

    print("KERNEL_OK")
</pallas_src>

<mosaic_0001>
module attributes {stable_mosaic.version = 11 : i64} {
  func.func @_chomp_copy_kernel(%arg0: i32, %arg1: i32, %arg2: memref<32x1024xf32, #tpu.memory_space<vmem>>, %arg3: memref<32x1024xf32, #tpu.memory_space<vmem>>) attributes {dimension_semantics = [#tpu.dimension_semantics<parallel>, #tpu.dimension_semantics<parallel>], iteration_bounds = array<i64: 1, 2>, scalar_prefetch = 0 : i64, scratch_operands = 0 : i64, tpu.core_type = #tpu.core_type<tc>, window_params = [{transform_indices = @transform_0, window_bounds = array<i64: 32, 1024>}, {transform_indices = @transform_1, window_bounds = array<i64: 32, 1024>}]} {
    %c0 = arith.constant 0 : index
    %c0_0 = arith.constant 0 : index
    %0 = vector.load %arg2[%c0, %c0_0] : memref<32x1024xf32, #tpu.memory_space<vmem>>, vector<32x1024xf32>
    %c0_1 = arith.constant 0 : index
    %c0_2 = arith.constant 0 : index
    %1 = vector.load %arg3[%c0_1, %c0_2] : memref<32x1024xf32, #tpu.memory_space<vmem>>, vector<32x1024xf32>
    tpu.vector_store %arg3[%c0_1, %c0_2], %0 {strides = array<i32>} : memref<32x1024xf32, #tpu.memory_space<vmem>>, vector<32x1024xf32>,
    return
  }
  func.func @transform_0(%arg0: i32, %arg1: i32) -> (i32, i32) {
    %c0_i32 = arith.constant 0 : i32
    return %arg0, %arg1 : i32, i32
  }
  func.func @transform_1(%arg0: i32, %arg1: i32) -> (i32, i32) {
    %c0_i32 = arith.constant 0 : i32
    return %arg0, %arg1 : i32, i32
  }
}

</mosaic_0001>

<llo_original>
// kernel: tpu_custom_call.1
$region0: #{tpu_custom_call.1}
  #allocation0 [shape = 'u32[]', space=smem, size = 0x4, offset = 0x4, fixed_abs, tag = 'smem constant byte address 0x4 - core index']
  #allocation1 [shape = 'u32[144,128]{1,0:T(1,128)}', space=vmem, size = 0x12000, scoped, tag = 'internal scratch']
  %s0 = inlined_call_operand.hbm [shape: f32[32,2051], index: 0, kind: input, shape index: {}]
  %s1 = inlined_call_operand.hbm [shape: f32[32,2048], index: 1, kind: output, shape index: {}]
  %s2 = sld [smem:[#allocation0]]
  $region41: #{tpu_custom_call.1} parent=0
    _
  %s4 = ssub.s32 1, %s2
  %s5 = scalar_select 0, %s4, %s2
  $region1: #{tpu_custom_call.1} parent=0
    #allocation2 [shape = 'u8[262144]{0}', space=vmem, size = 0x40000, scoped, tag = 'input window, operand 0']
    #allocation3 [shape = 's32[2]{0}', space=sflag, size = 0x8, scoped, tag = 'scoped memory for tpu_custom_call.1']
    #allocation4 [shape = 's32[2]{0}', space=sflag, size = 0x8, scoped, tag = 'scoped memory for tpu_custom_call.1']
    #allocation5 [shape = 'u8[262144]{0}', space=vmem, size = 0x40000, scoped, tag = 'output window, operand 0']
    %6 = vsyncpa [#allocation3], 0
    %s7 = scalar_lea.sflag [#allocation3], 1
    %8 = vsyncpa %s7, 0
    %9 = vsyncpa [#allocation4], 0
    %s10 = scalar_lea.sflag [#allocation4], 1
    %11 = vsyncpa %s10, 0
    loop: start=0, step=1, limit=4
    $region2: #{tpu_custom_call.1} parent=1 // loop_pre_header
      _
    $region3: #{tpu_custom_call.1} parent=1 // loop_header
      %s13 = sphi 0, %s17
      %p14 = scmp.ge.s32.totalorder %s13, 4
      %s20 = sphi 0, %s32
      %s21 = sphi 0, %s28
      %s22 = sphi 0, %s20
      %s23 = sphi 0, %s21
      %s24 = sphi 0, %s22
      %s25 = sphi 0, %s23
      %s37 = sphi 0, %s39
      %s40 = sphi 0, %s37
      %s41 = sphi 0, %s40
      %s57 = sphi 0, %s41
      %s65 = sphi 0, %s67
      %s68 = sphi 0, %s65
      %s69 = sphi 0, %s68
      %s85 = sphi 0, %s69
    $region4: #{tpu_custom_call.1} parent=1 // loop_header_branch
      %16 = sbr.rel (%p14) target = $region8
    $region5: #{tpu_custom_call.1} parent=1 // loop_body
      %s18 = ssub.s32 %s13, 1
      %s19 = ssub.s32 %s13, 2
      %s26 = sadd.s32 1, %s21
      %p27 = scmp.ge.s32.totalorder %s26, 2
      %s28 = scalar_select %p27, 0, %s26
      %s29 = sadd.s32 1, %s20
      %s30 = scalar_select %p27, %s29, %s20
      %p31 = scmp.ge.s32.totalorder %s30, 1
      %s32 = scalar_select %p31, 0, %s30
      %s33 = ssub.s32 %s20, %s32
      %s34 = ssub.s32 %s21, %s28
      %s35 = sor.u32 %s33, %s34
      %p36 = scmp.eq.s32.totalorder %s35, 0
      %s38 = sadd.s32 %s37, 1
      %s39 = scalar_select %p36, %s37, %s38
      %p42 = pneg %p36
      %p43 = scmp.eq.s32.totalorder %s13, 1
      %p44 = por %p42, %p43
      %p45 = scmp.ne.s32.totalorder %s37, %s40
      %p46 = scmp.eq.s32.totalorder %s13, 0
      %p47 = por %p45, %p46
      %p48 = scmp.ne.s32.totalorder %s37, %s40
      %p49 = scmp.eq.s32.totalorder %s18, 1
      %p50 = por %p48, %p49
      %p51 = scmp.ne.s32.totalorder %s40, %s41
      %p52 = scmp.eq.s32.totalorder %s18, 0
      %p53 = por %p51, %p52
      %p54 = scmp.ne.s32.totalorder %s40, %s41
      %p55 = scmp.eq.s32.totalorder %s19, 1
      %p56 = por %p54, %p55
      %p58 = scmp.ne.s32.totalorder %s41, %s57
      %p59 = scmp.eq.s32.totalorder %s19, 0
      %p60 = por %p58, %p59
      %s61 = ssub.s32 %s20, %s32
      %s62 = ssub.s32 %s21, %s28
      %s63 = sor.u32 %s61, %s62
      %p64 = scmp.eq.s32.totalorder %s63, 0
      %s66 = sadd.s32 %s65, 1
      %s67 = scalar_select %p64, %s65, %s66
      %p70 = pneg %p64
      %p71 = scmp.eq.s32.totalorder %s13, 1
      %p72 = por %p70, %p71
      %p73 = scmp.ne.s32.totalorder %s65, %s68
      %p74 = scmp.eq.s32.totalorder %s13, 0
      %p75 = por %p73, %p74
      %p76 = scmp.ne.s32.totalorder %s65, %s68
      %p77 = scmp.eq.s32.totalorder %s18, 1
      %p78 = por %p76, %p77
      %p79 = scmp.ne.s32.totalorder %s68, %s69
      %p80 = scmp.eq.s32.totalorder %s18, 0
      %p81 = por %p79, %p80
      %p82 = scmp.ne.s32.totalorder %s68, %s69
      %p83 = scmp.eq.s32.totalorder %s19, 1
      %p84 = por %p82, %p83
      %p86 = scmp.ne.s32.totalorder %s69, %s85
      %p87 = scmp.eq.s32.totalorder %s19, 0
      %p88 = por %p86, %p87
      %p89 = scmp.le.s32.totalorder 1, %s13
      %p90 = scmp.lt.s32.totalorder %s13, 3
      %p91 = pnand %p89, %p90
      %p92 = pneg %p91
      // Predicated region
      $region9: #{tpu_custom_call.1} parent=5 // pred_check
        _
      $region10: #{tpu_custom_call.1} parent=5 // pred_check_branch
        %94 = sbr.rel (%p91) target = $region12
      $region11: #{tpu_custom_call.1} parent=5 // pred_region
        %s95 = ssub.s32 %s13, 1
      $region12: #{tpu_custom_call.1} parent=5 // pred_fallthru
        _
      %p96 = scmp.lt.s32.totalorder %s13, 2
      // Predicated region
      $region13: #{tpu_custom_call.1} parent=5 // pred_check
        %p97 = pneg %p96
      $region14: #{tpu_custom_call.1} parent=5 // pred_check_branch
        %99 = sbr.rel (%p97) target = $region16
      $region15: #{tpu_custom_call.1} parent=5 // pred_region
        // Predicated region
        $region17: #{tpu_custom_call.1} parent=15 // pred_check
          %p100 = pneg %p47
        $region18: #{tpu_custom_call.1} parent=15 // pred_check_branch
          %102 = sbr.rel (%p100) target = $region20
        $region19: #{tpu_custom_call.1} parent=15 // pred_region
          %s103 = sand.u32 %s37, 1
          %s104 = scalar_lea.sflag [#allocation3], %s103
          %s105 = sand.u32 %s37, 1
          %s106 = smul.addr %s105, 256
          %s107 = scalar_lea.vmem [#allocation2], %s106
          %s108 = smul.u32 4, %s20
          %s109 = smul.u32 8, %s21
          %s110 = ssub.s32 17, %s109
          %p111 = scmp.lt.s32.totalorder %s110, 8
          %s112 = scalar_select %p111, %s110, 8
          %s113 = smul.u32 512, %s112
          %s115 = ssub.s32 4096, %s113
          %116 = vsyncadd %s104, %s115
          %p117 = scmp.ne.s32.totalorder 0, %s113
          %s118 = smul.addr %s108, 17
          %s119 = sadd.s32 %s109, %s118
          %s120 = smul.addr %s119, 128
          %s121 = scalar_lea.hbm %s0, %s120
          %s122 = smul.u32 %s112, 8
          %s123 = smul.u32 %s122, 4
          %s124 = sshll.u32 %s107, 4
          %s125 = int_to_ptr.vmem [resolvable:$true] %s124
          %s126 = sshll.u32 %s123, 4
          %130 = dma.hbm_to_vmem [thread:$0]  (%p117), %s121, %s126, %s125, %s104, 2176, 1024, %s122
        $region20: #{tpu_custom_call.1} parent=15 // pred_fallthru
          _
      $region16: #{tpu_custom_call.1} parent=5 // pred_fallthru
        _
      %p131 = scmp.le.s32.totalorder 1, %s13
      %p132 = scmp.lt.s32.totalorder %s13, 3
      %p133 = pnand %p131, %p132
      %p134 = pneg %p133
      // Predicated region
      $region21: #{tpu_custom_call.1} parent=5 // pred_check
        _
      $region22: #{tpu_custom_call.1} parent=5 // pred_check_branch
        %136 = sbr.rel (%p133) target = $region24
      $region23: #{tpu_custom_call.1} parent=5 // pred_region
        %s137 = ssub.s32 %s13, 1
        %s138 = sand.u32 %s40, 1
        %s139 = scalar_lea.sflag [#allocation3], %s138
        %s140 = sand.u32 %s40, 1
        %s141 = smul.addr %s140, 256
        %s142 = scalar_lea.vmem [#allocation2], %s141
        // Predicated region
        $region25: #{tpu_custom_call.1} parent=23 // pred_check
          %p143 = pneg %p53
        $region26: #{tpu_custom_call.1} parent=23 // pred_check_branch
          %145 = sbr.rel (%p143) target = $region28
        $region27: #{tpu_custom_call.1} parent=23 // pred_region
          %146 = dma.done %s139, 4096
        $region28: #{tpu_custom_call.1} parent=23 // pred_fallthru
          _
        %s147 = sand.u32 %s40, 1
        %s148 = scalar_lea.sflag [#allocation3], %s147
        %s149 = sand.u32 %s40, 1
        %s150 = smul.addr %s149, 256
        %s151 = scalar_lea.vmem [#allocation2], %s150
        %p152 = pneg %p53
        %p153 = pneg %p50
        %p154 = pneg %p81
        %p155 = pneg %p78
        %s156 = sand.u32 %s68, 1
        %s157 = scalar_lea.sflag [#allocation4], %s156
        %s158 = sand.u32 %s68, 1
        %s159 = smul.addr %s158, 256
        %s160 = scalar_lea.vmem [#allocation5], %s159
        %s161 = smul.u32 4, %s22
        %s162 = smul.u32 8, %s23
        %s163 = ssub.s32 17, %s162
        %p164 = scmp.lt.s32.totalorder %s163, 8
        %s165 = scalar_select %p164, %s163, 8
        %s166 = smul.u32 512, %s165
        %s167 = smul.u32 4, %s22
        %s168 = smul.u32 8, %s23
        %v169 = vld [vmem:[%s142] sm:$0xff]
        %v170 = vld [vmem:[%s142 + $0x8] sm:$0xff]
        %v171 = vld [vmem:[%s142 + $0x10] sm:$0xff]
        %v172 = vld [vmem:[%s142 + $0x18] sm:$0xff]
        %v173 = vld [vmem:[%s142 + $0x20] sm:$0xff]
        %v174 = vld [vmem:[%s142 + $0x28] sm:$0xff]
        %v175 = vld [vmem:[%s142 + $0x30] sm:$0xff]
        %v176 = vld [vmem:[%s142 + $0x38] sm:$0xff]
        %v177 = vld [vmem:[%s142 + $0x40] sm:$0xff]
        %v178 = vld [vmem:[%s142 + $0x48] sm:$0xff]
        %v179 = vld [vmem:[%s142 + $0x50] sm:$0xff]
        %v180 = vld [vmem:[%s142 + $0x58] sm:$0xff]
        %v181 = vld [vmem:[%s142 + $0x60] sm:$0xff]
        %v182 = vld [vmem:[%s142 + $0x68] sm:$0xff]
        %v183 = vld [vmem:[%s142 + $0x70] sm:$0xff]
        %v184 = vld [vmem:[%s142 + $0x78] sm:$0xff]
        %v185 = vld [vmem:[%s142 + $0x80] sm:$0xff]
        %v186 = vld [vmem:[%s142 + $0x88] sm:$0xff]
        %v187 = vld [vmem:[%s142 + $0x90] sm:$0xff]
        %v188 = vld [vmem:[%s142 + $0x98] sm:$0xff]
        %v189 = vld [vmem:[%s142 + $0xa0] sm:$0xff]
        %v190 = vld [vmem:[%s142 + $0xa8] sm:$0xff]
        %v191 = vld [vmem:[%s142 + $0xb0] sm:$0xff]
        %v192 = vld [vmem:[%s142 + $0xb8] sm:$0xff]
        %v193 = vld [vmem:[%s142 + $0xc0] sm:$0xff]
        %v194 = vld [vmem:[%s142 + $0xc8] sm:$0xff]
        %v195 = vld [vmem:[%s142 + $0xd0] sm:$0xff]
        %v196 = vld [vmem:[%s142 + $0xd8] sm:$0xff]
        %v197 = vld [vmem:[%s142 + $0xe0] sm:$0xff]
        %v198 = vld [vmem:[%s142 + $0xe8] sm:$0xff]
        %v199 = vld [vmem:[%s142 + $0xf0] sm:$0xff]
        %v200 = vld [vmem:[%s142 + $0xf8] sm:$0xff]
        %201 = vst [vmem:[%s160] sm:$0xff] %v169
        %202 = vst [vmem:[%s160 + $0x8] sm:$0xff] %v170
        %203 = vst [vmem:[%s160 + $0x10] sm:$0xff] %v171
        %204 = vst [vmem:[%s160 + $0x18] sm:$0xff] %v172
        %205 = vst [vmem:[%s160 + $0x20] sm:$0xff] %v173
        %206 = vst [vmem:[%s160 + $0x28] sm:$0xff] %v174
        %207 = vst [vmem:[%s160 + $0x30] sm:$0xff] %v175
        %208 = vst [vmem:[%s160 + $0x38] sm:$0xff] %v176
        %209 = vst [vmem:[%s160 + $0x40] sm:$0xff] %v177
        %210 = vst [vmem:[%s160 + $0x48] sm:$0xff] %v178
        %211 = vst [vmem:[%s160 + $0x50] sm:$0xff] %v179
        %212 = vst [vmem:[%s160 + $0x58] sm:$0xff] %v180
        %213 = vst [vmem:[%s160 + $0x60] sm:$0xff] %v181
        %214 = vst [vmem:[%s160 + $0x68] sm:$0xff] %v182
        %215 = vst [vmem:[%s160 + $0x70] sm:$0xff] %v183
        %216 = vst [vmem:[%s160 + $0x78] sm:$0xff] %v184
        %217 = vst [vmem:[%s160 + $0x80] sm:$0xff] %v185
        %218 = vst [vmem:[%s160 + $0x88] sm:$0xff] %v186
        %219 = vst [vmem:[%s160 + $0x90] sm:$0xff] %v187
        %220 = vst [vmem:[%s160 + $0x98] sm:$0xff] %v188
        %221 = vst [vmem:[%s160 + $0xa0] sm:$0xff] %v189
        %222 = vst [vmem:[%s160 + $0xa8] sm:$0xff] %v190
        %223 = vst [vmem:[%s160 + $0xb0] sm:$0xff] %v191
        %224 = vst [vmem:[%s160 + $0xb8] sm:$0xff] %v192
        %225 = vst [vmem:[%s160 + $0xc0] sm:$0xff] %v193
        %226 = vst [vmem:[%s160 + $0xc8] sm:$0xff] %v194
        %227 = vst [vmem:[%s160 + $0xd0] sm:$0xff] %v195
        %228 = vst [vmem:[%s160 + $0xd8] sm:$0xff] %v196
        %229 = vst [vmem:[%s160 + $0xe0] sm:$0xff] %v197
        %230 = vst [vmem:[%s160 + $0xe8] sm:$0xff] %v198
        %231 = vst [vmem:[%s160 + $0xf0] sm:$0xff] %v199
        %232 = vst [vmem:[%s160 + $0xf8] sm:$0xff] %v200
        %s233 = sand.u32 %s68, 1
        %s234 = scalar_lea.sflag [#allocation4], %s233
        %s235 = sand.u32 %s68, 1
        %s236 = smul.addr %s235, 256
        %s237 = scalar_lea.vmem [#allocation5], %s236
        // Predicated region
        $region29: #{tpu_custom_call.1} parent=23 // pred_check
          %p238 = pneg %p78
        $region30: #{tpu_custom_call.1} parent=23 // pred_check_branch
          %240 = sbr.rel (%p238) target = $region32
        $region31: #{tpu_custom_call.1} parent=23 // pred_region
          %s241 = smul.u32 4, %s22
          %s242 = smul.u32 8, %s23
          %s244 = ssub.s32 4096, 4096
          %245 = vsyncadd %s234, %s244
          %s246 = smul.addr %s241, 16
          %s247 = sadd.s32 %s242, %s246
          %s248 = smul.addr %s247, 128
          %s249 = scalar_lea.hbm %s1, %s248
          %s250 = sshll.u32 %s237, 4
          %s251 = int_to_ptr.vmem [resolvable:$true] %s250
          %256 = dma.vmem_to_hbm [thread:$0]  %s251, 4096, %s249, %s234, 1024, 2048, 64
        $region32: #{tpu_custom_call.1} parent=23 // pred_fallthru
          _
      $region24: #{tpu_custom_call.1} parent=5 // pred_fallthru
        _
      %p257 = scmp.le.s32.totalorder 2, %s13
      // Predicated region
      $region33: #{tpu_custom_call.1} parent=5 // pred_check
        %p258 = pneg %p257
      $region34: #{tpu_custom_call.1} parent=5 // pred_check_branch
        %260 = sbr.rel (%p258) target = $region36
      $region35: #{tpu_custom_call.1} parent=5 // pred_region
        %s261 = ssub.s32 %s13, 2
        // Predicated region
        $region37: #{tpu_custom_call.1} parent=35 // pred_check
          %p262 = pneg %p84
        $region38: #{tpu_custom_call.1} parent=35 // pred_check_branch
          %264 = sbr.rel (%p262) target = $region40
        $region39: #{tpu_custom_call.1} parent=35 // pred_region
          %s265 = sand.u32 %s69, 1
          %s266 = scalar_lea.sflag [#allocation4], %s265
          %s267 = sand.u32 %s69, 1
          %s268 = smul.addr %s267, 256
          %s269 = scalar_lea.vmem [#allocation5], %s268
          %270 = dma.done %s266, 4096
        $region40: #{tpu_custom_call.1} parent=35 // pred_fallthru
          _
      $region36: #{tpu_custom_call.1} parent=5 // pred_fallthru
        _
    $region6: #{tpu_custom_call.1} parent=1 // loop_footer
      %s17 = sadd.s32 1, %s13
    $region7: #{tpu_custom_call.1} parent=1 // loop_footer_branch
      %12 = sbr.rel target = $region3
    $region8: #{tpu_custom_call.1} parent=1 // loop_exit
      _
    %271 = vsyncpa [#allocation3], 1
    %s272 = scalar_lea.sflag [#allocation3], 1
    %273 = vsyncpa %s272, 1
    %274 = vsyncpa [#allocation4], 1
    %s275 = scalar_lea.sflag [#allocation4], 1
    %276 = vsyncpa %s275, 1

</llo_original>
